<compile_context>
chip_gen: v7x
topology: tpu7x:2x2x1
jax: 0.10.0
libtpu: 0.0.40
codegen_flags: <defaults>
</compile_context>

<pallas_src>
import functools

import jax
import jax.numpy as jnp
from jax import lax
from jax.experimental import pallas as pl
from jax.experimental.pallas import tpu as pltpu


def _round_up(x, m):
    return ((x + m - 1) // m) * m


# ---------------------------------------------------------------------------
# Stage 1: E = relu( (1/deg_e) * sum_{v in e} (X[v] @ W1^T + b1) )
# Grid: (edge tiles [parallel], vertex tiles [reduction, last]).
# ---------------------------------------------------------------------------
def _v2e_kernel(x_ref, h_ref, w1_ref, b1_ref, invde_ref, e_ref, acc_ref):
    @pl.when(pl.program_id(1) == 0)
    def _():
        acc_ref[...] = jnp.zeros_like(acc_ref)

    # Per-vertex projection; bias added per vertex so the edge-mean matches
    # the reference exactly (including zero-degree edges).
    xp = jnp.dot(x_ref[...], w1_ref[...],
                 preferred_element_type=jnp.float32) + b1_ref[...]
    h = h_ref[...].astype(jnp.float32)            # 0/1 values, exact in bf16
    # acc[e, c] += sum_v H[v, e] * Xp[v, c]   (H^T @ Xp without materialising H^T)
    acc_ref[...] += lax.dot_general(
        h, xp, dimension_numbers=(((0,), (0,)), ((), ())),
        preferred_element_type=jnp.float32)

    @pl.when(pl.program_id(1) == pl.num_programs(1) - 1)
    def _():
        e_ref[...] = jnp.maximum(acc_ref[...] * invde_ref[...], 0.0)


# ---------------------------------------------------------------------------
# Stage 2: Xo = relu( (1/deg_v) * sum_{e contains v} (E[e] @ W2^T + b2) )
# Grid: (vertex tiles [parallel], edge tiles [reduction, last]).
# ---------------------------------------------------------------------------
def _e2v_kernel(e_ref, h_ref, w2_ref, b2_ref, invdv_ref, o_ref, acc_ref):
    @pl.when(pl.program_id(1) == 0)
    def _():
        acc_ref[...] = jnp.zeros_like(acc_ref)

    e2 = jnp.dot(e_ref[...], w2_ref[...],
                 preferred_element_type=jnp.float32) + b2_ref[...]
    h = h_ref[...].astype(jnp.float32)
    acc_ref[...] += jnp.dot(h, e2, preferred_element_type=jnp.float32)

    @pl.when(pl.program_id(1) == pl.num_programs(1) - 1)
    def _():
        o_ref[...] = jnp.maximum(acc_ref[...] * invdv_ref[...], 0.0)


@functools.partial(jax.jit, static_argnames=("tile_v", "tile_e"))
def hnhn_conv(X, H, W1, b1, W2, b2, *, tile_v=512, tile_e=256):
    """X: (N_v, C_in) f32; H: (N_v, N_e) 0/1 incidence; W1: (C_out, C_in);
    b1: (C_out,); W2: (C_out, C_out); b2: (C_out,). Returns (N_v, C_out)."""
    N_v, C_in = X.shape
    N_e = H.shape[1]
    C_out = W1.shape[0]
    f32 = jnp.float32

    # Lane/sublane-aligned padded sizes and tiles.
    C_in_p = _round_up(C_in, 128)
    C_out_p = _round_up(C_out, 128)
    tv = min(tile_v, _round_up(N_v, 8))       # vertex tile (sublane-aligned)
    te = min(tile_e, _round_up(N_e, 128))     # edge tile (lane-aligned)
    N_v_p = _round_up(N_v, tv)
    N_e_p = _round_up(N_e, te)

    # Zero-padded operands (exact: padded rows/cols contribute nothing).
    Xp = jnp.pad(X.astype(f32), ((0, N_v_p - N_v), (0, C_in_p - C_in)))
    Hp = jnp.pad(H.astype(f32), ((0, N_v_p - N_v), (0, N_e_p - N_e)))
    Hb = Hp.astype(jnp.bfloat16)              # exact for 0/1 incidence values
    W1t = jnp.pad(W1.T.astype(f32), ((0, C_in_p - C_in), (0, C_out_p - C_out)))
    W2t = jnp.pad(W2.T.astype(f32), ((0, C_out_p - C_out), (0, C_out_p - C_out)))
    b1p = jnp.pad(b1.astype(f32), (0, C_out_p - C_out)).reshape(1, C_out_p)
    b2p = jnp.pad(b2.astype(f32), (0, C_out_p - C_out)).reshape(1, C_out_p)

    # Exact f32 reciprocal degrees, precomputed once (no in-kernel row sums).
    inv_de = (1.0 / jnp.maximum(Hp.sum(axis=0), 1.0)).reshape(N_e_p, 1)
    inv_dv = (1.0 / jnp.maximum(Hp.sum(axis=1), 1.0)).reshape(N_v_p, 1)

    compiler_params = pltpu.CompilerParams(
        dimension_semantics=("parallel", "arbitrary"),
        vmem_limit_bytes=32 * 1024 * 1024)

    n_et = N_e_p // te
    n_vt = N_v_p // tv

    # ---- Stage 1: vertices -> edges ---------------------------------------
    E = pl.pallas_call(
        _v2e_kernel,
        out_shape=jax.ShapeDtypeStruct((N_e_p, C_out_p), f32),
        grid_spec=pltpu.PrefetchScalarGridSpec(
            num_scalar_prefetch=0,
            grid=(n_et, n_vt),
            in_specs=[
                pl.BlockSpec((tv, C_in_p), lambda e, v: (v, 0)),        # X
                pl.BlockSpec((tv, te), lambda e, v: (v, e)),            # H (bf16)
                pl.BlockSpec((C_in_p, C_out_p), lambda e, v: (0, 0)),   # W1^T
                pl.BlockSpec((1, C_out_p), lambda e, v: (0, 0)),        # b1
                pl.BlockSpec((te, 1), lambda e, v: (e, 0)),             # 1/deg_e
            ],
            out_specs=pl.BlockSpec((te, C_out_p), lambda e, v: (e, 0)),
            scratch_shapes=[pltpu.VMEM((te, C_out_p), f32)],
        ),
        compiler_params=compiler_params,
        cost_estimate=pl.CostEstimate(
            flops=2 * N_v_p * N_e_p * C_out_p
                  + 2 * N_v_p * C_in_p * C_out_p * n_et,
            transcendentals=0,
            bytes_accessed=Xp.size * 4 + Hb.size * 2 + N_e_p * C_out_p * 4),
    )(Xp, Hb, W1t, b1p, inv_de)

    # ---- Stage 2: edges -> vertices ---------------------------------------
    Xo = pl.pallas_call(
        _e2v_kernel,
        out_shape=jax.ShapeDtypeStruct((N_v_p, C_out_p), f32),
        grid_spec=pltpu.PrefetchScalarGridSpec(
            num_scalar_prefetch=0,
            grid=(n_vt, n_et),
            in_specs=[
                pl.BlockSpec((te, C_out_p), lambda v, e: (e, 0)),       # E
                pl.BlockSpec((tv, te), lambda v, e: (v, e)),            # H (bf16)
                pl.BlockSpec((C_out_p, C_out_p), lambda v, e: (0, 0)),  # W2^T
                pl.BlockSpec((1, C_out_p), lambda v, e: (0, 0)),        # b2
                pl.BlockSpec((tv, 1), lambda v, e: (v, 0)),             # 1/deg_v
            ],
            out_specs=pl.BlockSpec((tv, C_out_p), lambda v, e: (v, 0)),
            scratch_shapes=[pltpu.VMEM((tv, C_out_p), f32)],
        ),
        compiler_params=compiler_params,
        cost_estimate=pl.CostEstimate(
            flops=2 * N_v_p * N_e_p * C_out_p
                  + 2 * N_e_p * C_out_p * C_out_p * n_vt,
            transcendentals=0,
            bytes_accessed=Hb.size * 2 + N_e_p * C_out_p * 4
                           + N_v_p * C_out_p * 4),
    )(E, Hb, W2t, b2p, inv_dv)

    return Xo[:N_v, :C_out]


if __name__ == "__main__":
    key = jax.random.PRNGKey(0)
    k_x, k_h, k_w1, k_b1, k_w2, k_b2 = jax.random.split(key, 6)

    N_v, N_e = 32, 16                    # |V| vertices, |E| hyperedges
    C_in, C_out = 16, 32

    X = jax.random.normal(k_x, (N_v, C_in), dtype=jnp.float32)
    # Dense 0/1 incidence matrix (each vertex belongs to ~30% of edges).
    H = (jax.random.uniform(k_h, (N_v, N_e)) < 0.3).astype(jnp.float32)

    # Deterministic nn.Linear-style init: U(-1/sqrt(fan_in), 1/sqrt(fan_in)).
    bound1 = 1.0 / (C_in ** 0.5)
    W1 = jax.random.uniform(k_w1, (C_out, C_in), minval=-bound1, maxval=bound1,
                            dtype=jnp.float32)
    b1 = jax.random.uniform(k_b1, (C_out,), minval=-bound1, maxval=bound1,
                            dtype=jnp.float32)
    bound2 = 1.0 / (C_out ** 0.5)
    W2 = jax.random.uniform(k_w2, (C_out, C_out), minval=-bound2, maxval=bound2,
                            dtype=jnp.float32)
    b2 = jax.random.uniform(k_b2, (C_out,), minval=-bound2, maxval=bound2,
                            dtype=jnp.float32)

    out = hnhn_conv(X, H, W1, b1, W2, b2)
    jax.block_until_ready(out)

    # Pure-JAX reference check (same semantics as the PyTorch module, eval mode).
    xp_ref = X @ W1.T + b1
    deg_e = jnp.maximum(H.sum(0), 1.0)[:, None]
    e_ref = jnp.maximum((H.T @ xp_ref) / deg_e, 0.0)
    e2_ref = e_ref @ W2.T + b2
    deg_v = jnp.maximum(H.sum(1), 1.0)[:, None]
    ref = jnp.maximum((H @ e2_ref) / deg_v, 0.0)

    assert out.shape == (N_v, C_out)
    assert jnp.allclose(out, ref, atol=1e-4, rtol=1e-4), float(
        jnp.max(jnp.abs(out - ref)))

    print("KERNEL_OK")
</pallas_src>

<mosaic_0001>
module attributes {stable_mosaic.version = 11 : i64} {
  func.func @_v2e_kernel(%arg0: i32, %arg1: i32, %arg2: memref<32x128xf32, #tpu.memory_space<vmem>>, %arg3: memref<32x128xbf16, #tpu.memory_space<vmem>>, %arg4: memref<128x128xf32, #tpu.memory_space<vmem>>, %arg5: memref<1x128xf32, #tpu.memory_space<vmem>>, %arg6: memref<128x1xf32, #tpu.memory_space<vmem>>, %arg7: memref<128x128xf32, #tpu.memory_space<vmem>>, %arg8: memref<128x128xf32, #tpu.memory_space<vmem>>) attributes {dimension_semantics = [#tpu.dimension_semantics<parallel>, #tpu.dimension_semantics<arbitrary>], iteration_bounds = array<i64: 1, 1>, scalar_prefetch = 0 : i64, scratch_operands = 1 : i64, tpu.core_type = #tpu.core_type<tc>, window_params = [{transform_indices = @transform_0, window_bounds = array<i64: 32, 128>}, {transform_indices = @transform_1, window_bounds = array<i64: 32, 128>}, {pipeline_mode = #tpu.pipeline_mode<synchronous>, transform_indices = @transform_2, window_bounds = array<i64: 128, 128>}, {pipeline_mode = #tpu.pipeline_mode<synchronous>, transform_indices = @transform_3, window_bounds = array<i64: 1, 128>}, {transform_indices = @transform_4, window_bounds = array<i64: 128, 1>}, {transform_indices = @transform_5, window_bounds = array<i64: 128, 128>}]} {
    %c0_i32 = arith.constant 0 : i32
    %0 = arith.cmpi eq, %arg1, %c0_i32 : i32
    %1 = arith.extui %0 : i1 to i32
    %c0_i32_0 = arith.constant 0 : i32
    %2 = arith.cmpi ne, %1, %c0_i32_0 : i32
    scf.if %2 {
      %cst_15 = arith.constant 0.000000e+00 : f32
      %18 = vector.broadcast %cst_15 : f32 to vector<128x128xf32>
      %c0_16 = arith.constant 0 : index
      %c0_17 = arith.constant 0 : index
      %19 = vector.load %arg8[%c0_16, %c0_17] : memref<128x128xf32, #tpu.memory_space<vmem>>, vector<128x128xf32>
      tpu.vector_store %arg8[%c0_16, %c0_17], %18 {strides = array<i32>} : memref<128x128xf32, #tpu.memory_space<vmem>>, vector<128x128xf32>,
    } else {
    }
    %c0 = arith.constant 0 : index
    %c0_1 = arith.constant 0 : index
    %3 = vector.load %arg2[%c0, %c0_1] : memref<32x128xf32, #tpu.memory_space<vmem>>, vector<32x128xf32>
    %c0_2 = arith.constant 0 : index
    %c0_3 = arith.constant 0 : index
    %4 = vector.load %arg4[%c0_2, %c0_3] : memref<128x128xf32, #tpu.memory_space<vmem>>, vector<128x128xf32>
    %cst = arith.constant dense<0.000000e+00> : vector<32x128xf32>
    %5 = tpu.matmul %3, %4, %cst {dimension_numbers = #tpu.dot_dimension_numbers<[1], [0], [0], [1], [0, 0, 1, 1], [], []>} : vector<32x128xf32>, vector<128x128xf32>, vector<32x128xf32> -> vector<32x128xf32>
    %c0_4 = arith.constant 0 : index
    %c0_5 = arith.constant 0 : index
    %6 = vector.load %arg5[%c0_4, %c0_5] : memref<1x128xf32, #tpu.memory_space<vmem>>, vector<1x128xf32>
    %7 = vector.broadcast %6 : vector<1x128xf32> to vector<32x128xf32>
    %8 = arith.addf %5, %7 : vector<32x128xf32>
    %c0_6 = arith.constant 0 : index
    %c0_7 = arith.constant 0 : index
    %9 = vector.load %arg3[%c0_6, %c0_7] : memref<32x128xbf16, #tpu.memory_space<vmem>>, vector<32x128xbf16>
    %10 = arith.extf %9 : vector<32x128xbf16> to vector<32x128xf32>
    %c0_8 = arith.constant 0 : index
    %c0_9 = arith.constant 0 : index
    %11 = vector.load %arg8[%c0_8, %c0_9] : memref<128x128xf32, #tpu.memory_space<vmem>>, vector<128x128xf32>
    %cst_10 = arith.constant dense<0.000000e+00> : vector<128x128xf32>
    %12 = tpu.matmul %10, %8, %cst_10 {dimension_numbers = #tpu.dot_dimension_numbers<[0], [0], [1], [1], [0, 1, 1, 1], [], []>} : vector<32x128xf32>, vector<32x128xf32>, vector<128x128xf32> -> vector<128x128xf32>
    %13 = arith.addf %11, %12 : vector<128x128xf32>
    %c0_11 = arith.constant 0 : index
    %c0_12 = arith.constant 0 : index
    %14 = vector.load %arg8[%c0_11, %c0_12] : memref<128x128xf32, #tpu.memory_space<vmem>>, vector<128x128xf32>
    tpu.vector_store %arg8[%c0_11, %c0_12], %13 {strides = array<i32>} : memref<128x128xf32, #tpu.memory_space<vmem>>, vector<128x128xf32>,
    %c0_i32_13 = arith.constant 0 : i32
    %15 = arith.cmpi eq, %arg1, %c0_i32_13 : i32
    %16 = arith.extui %15 : i1 to i32
    %c0_i32_14 = arith.constant 0 : i32
    %17 = arith.cmpi ne, %16, %c0_i32_14 : i32
    scf.if %17 {
      %c0_15 = arith.constant 0 : index
      %c0_16 = arith.constant 0 : index
      %18 = vector.load %arg8[%c0_15, %c0_16] : memref<128x128xf32, #tpu.memory_space<vmem>>, vector<128x128xf32>
      %c0_17 = arith.constant 0 : index
      %c0_18 = arith.constant 0 : index
      %19 = vector.load %arg6[%c0_17, %c0_18] : memref<128x1xf32, #tpu.memory_space<vmem>>, vector<128x1xf32>
      %20 = vector.broadcast %19 : vector<128x1xf32> to vector<128x128xf32>
      %21 = arith.mulf %18, %20 : vector<128x128xf32>
      %cst_19 = arith.constant 0.000000e+00 : f32
      %22 = vector.broadcast %cst_19 : f32 to vector<128x128xf32>
      %23 = arith.maximumf %21, %22 : vector<128x128xf32>
      %c0_20 = arith.constant 0 : index
      %c0_21 = arith.constant 0 : index
      %24 = vector.load %arg7[%c0_20, %c0_21] : memref<128x128xf32, #tpu.memory_space<vmem>>, vector<128x128xf32>
      tpu.vector_store %arg7[%c0_20, %c0_21], %23 {strides = array<i32>} : memref<128x128xf32, #tpu.memory_space<vmem>>, vector<128x128xf32>,
    } else {
    }
    return
  }
  func.func @transform_0(%arg0: i32, %arg1: i32) -> (i32, i32) {
    %c0_i32 = arith.constant 0 : i32
    %c0_i32_0 = arith.constant 0 : i32
    return %arg1, %c0_i32 : i32, i32
  }
  func.func @transform_1(%arg0: i32, %arg1: i32) -> (i32, i32) {
    %c0_i32 = arith.constant 0 : i32
    return %arg1, %arg0 : i32, i32
  }
  func.func @transform_2(%arg0: i32, %arg1: i32) -> (i32, i32) {
    %c0_i32 = arith.constant 0 : i32
    %c0_i32_0 = arith.constant 0 : i32
    %c0_i32_1 = arith.constant 0 : i32
    return %c0_i32, %c0_i32_0 : i32, i32
  }
  func.func @transform_3(%arg0: i32, %arg1: i32) -> (i32, i32) {
    %c0_i32 = arith.constant 0 : i32
    %c0_i32_0 = arith.constant 0 : i32
    %c0_i32_1 = arith.constant 0 : i32
    return %c0_i32, %c0_i32_0 : i32, i32
  }
  func.func @transform_4(%arg0: i32, %arg1: i32) -> (i32, i32) {
    %c0_i32 = arith.constant 0 : i32
    %c0_i32_0 = arith.constant 0 : i32
    return %arg0, %c0_i32 : i32, i32
  }
  func.func @transform_5(%arg0: i32, %arg1: i32) -> (i32, i32) {
    %c0_i32 = arith.constant 0 : i32
    %c0_i32_0 = arith.constant 0 : i32
    return %arg0, %c0_i32 : i32, i32
  }
}

module attributes {stable_mosaic.version = 11 : i64} {
  func.func @_e2v_kernel(%arg0: i32, %arg1: i32, %arg2: memref<128x128xf32, #tpu.memory_space<vmem>>, %arg3: memref<32x128xbf16, #tpu.memory_space<vmem>>, %arg4: memref<128x128xf32, #tpu.memory_space<vmem>>, %arg5: memref<1x128xf32, #tpu.memory_space<vmem>>, %arg6: memref<32x1xf32, #tpu.memory_space<vmem>>, %arg7: memref<32x128xf32, #tpu.memory_space<vmem>>, %arg8: memref<32x128xf32, #tpu.memory_space<vmem>>) attributes {dimension_semantics = [#tpu.dimension_semantics<parallel>, #tpu.dimension_semantics<arbitrary>], iteration_bounds = array<i64: 1, 1>, scalar_prefetch = 0 : i64, scratch_operands = 1 : i64, tpu.core_type = #tpu.core_type<tc>, window_params = [{transform_indices = @transform_0, window_bounds = array<i64: 128, 128>}, {transform_indices = @transform_1, window_bounds = array<i64: 32, 128>}, {pipeline_mode = #tpu.pipeline_mode<synchronous>, transform_indices = @transform_2, window_bounds = array<i64: 128, 128>}, {pipeline_mode = #tpu.pipeline_mode<synchronous>, transform_indices = @transform_3, window_bounds = array<i64: 1, 128>}, {transform_indices = @transform_4, window_bounds = array<i64: 32, 1>}, {transform_indices = @transform_5, window_bounds = array<i64: 32, 128>}]} {
    %c0_i32 = arith.constant 0 : i32
    %0 = arith.cmpi eq, %arg1, %c0_i32 : i32
    %1 = arith.extui %0 : i1 to i32
    %c0_i32_0 = arith.constant 0 : i32
    %2 = arith.cmpi ne, %1, %c0_i32_0 : i32
    scf.if %2 {
      %cst_15 = arith.constant 0.000000e+00 : f32
      %18 = vector.broadcast %cst_15 : f32 to vector<32x128xf32>
      %c0_16 = arith.constant 0 : index
      %c0_17 = arith.constant 0 : index
      %19 = vector.load %arg8[%c0_16, %c0_17] : memref<32x128xf32, #tpu.memory_space<vmem>>, vector<32x128xf32>
      tpu.vector_store %arg8[%c0_16, %c0_17], %18 {strides = array<i32>} : memref<32x128xf32, #tpu.memory_space<vmem>>, vector<32x128xf32>,
    } else {
    }
    %c0 = arith.constant 0 : index
    %c0_1 = arith.constant 0 : index
    %3 = vector.load %arg2[%c0, %c0_1] : memref<128x128xf32, #tpu.memory_space<vmem>>, vector<128x128xf32>
    %c0_2 = arith.constant 0 : index
    %c0_3 = arith.constant 0 : index
    %4 = vector.load %arg4[%c0_2, %c0_3] : memref<128x128xf32, #tpu.memory_space<vmem>>, vector<128x128xf32>
    %cst = arith.constant dense<0.000000e+00> : vector<128x128xf32>
    %5 = tpu.matmul %3, %4, %cst {dimension_numbers = #tpu.dot_dimension_numbers<[1], [0], [0], [1], [0, 0, 1, 1], [], []>} : vector<128x128xf32>, vector<128x128xf32>, vector<128x128xf32> -> vector<128x128xf32>
    %c0_4 = arith.constant 0 : index
    %c0_5 = arith.constant 0 : index
    %6 = vector.load %arg5[%c0_4, %c0_5] : memref<1x128xf32, #tpu.memory_space<vmem>>, vector<1x128xf32>
    %7 = vector.broadcast %6 : vector<1x128xf32> to vector<128x128xf32>
    %8 = arith.addf %5, %7 : vector<128x128xf32>
    %c0_6 = arith.constant 0 : index
    %c0_7 = arith.constant 0 : index
    %9 = vector.load %arg3[%c0_6, %c0_7] : memref<32x128xbf16, #tpu.memory_space<vmem>>, vector<32x128xbf16>
    %10 = arith.extf %9 : vector<32x128xbf16> to vector<32x128xf32>
    %c0_8 = arith.constant 0 : index
    %c0_9 = arith.constant 0 : index
    %11 = vector.load %arg8[%c0_8, %c0_9] : memref<32x128xf32, #tpu.memory_space<vmem>>, vector<32x128xf32>
    %cst_10 = arith.constant dense<0.000000e+00> : vector<32x128xf32>
    %12 = tpu.matmul %10, %8, %cst_10 {dimension_numbers = #tpu.dot_dimension_numbers<[1], [0], [0], [1], [0, 0, 1, 1], [], []>} : vector<32x128xf32>, vector<128x128xf32>, vector<32x128xf32> -> vector<32x128xf32>
    %13 = arith.addf %11, %12 : vector<32x128xf32>
    %c0_11 = arith.constant 0 : index
    %c0_12 = arith.constant 0 : index
    %14 = vector.load %arg8[%c0_11, %c0_12] : memref<32x128xf32, #tpu.memory_space<vmem>>, vector<32x128xf32>
    tpu.vector_store %arg8[%c0_11, %c0_12], %13 {strides = array<i32>} : memref<32x128xf32, #tpu.memory_space<vmem>>, vector<32x128xf32>,
    %c0_i32_13 = arith.constant 0 : i32
    %15 = arith.cmpi eq, %arg1, %c0_i32_13 : i32
    %16 = arith.extui %15 : i1 to i32
    %c0_i32_14 = arith.constant 0 : i32
    %17 = arith.cmpi ne, %16, %c0_i32_14 : i32
    scf.if %17 {
      %c0_15 = arith.constant 0 : index
      %c0_16 = arith.constant 0 : index
      %18 = vector.load %arg8[%c0_15, %c0_16] : memref<32x128xf32, #tpu.memory_space<vmem>>, vector<32x128xf32>
      %c0_17 = arith.constant 0 : index
      %c0_18 = arith.constant 0 : index
      %19 = vector.load %arg6[%c0_17, %c0_18] : memref<32x1xf32, #tpu.memory_space<vmem>>, vector<32x1xf32>
      %20 = vector.broadcast %19 : vector<32x1xf32> to vector<32x128xf32>
      %21 = arith.mulf %18, %20 : vector<32x128xf32>
      %cst_19 = arith.constant 0.000000e+00 : f32
      %22 = vector.broadcast %cst_19 : f32 to vector<32x128xf32>
      %23 = arith.maximumf %21, %22 : vector<32x128xf32>
      %c0_20 = arith.constant 0 : index
      %c0_21 = arith.constant 0 : index
      %24 = vector.load %arg7[%c0_20, %c0_21] : memref<32x128xf32, #tpu.memory_space<vmem>>, vector<32x128xf32>
      tpu.vector_store %arg7[%c0_20, %c0_21], %23 {strides = array<i32>} : memref<32x128xf32, #tpu.memory_space<vmem>>, vector<32x128xf32>,
    } else {
    }
    return
  }
  func.func @transform_0(%arg0: i32, %arg1: i32) -> (i32, i32) {
    %c0_i32 = arith.constant 0 : i32
    %c0_i32_0 = arith.constant 0 : i32
    return %arg1, %c0_i32 : i32, i32
  }
  func.func @transform_1(%arg0: i32, %arg1: i32) -> (i32, i32) {
    %c0_i32 = arith.constant 0 : i32
    return %arg0, %arg1 : i32, i32
  }
  func.func @transform_2(%arg0: i32, %arg1: i32) -> (i32, i32) {
    %c0_i32 = arith.constant 0 : i32
    %c0_i32_0 = arith.constant 0 : i32
    %c0_i32_1 = arith.constant 0 : i32
    return %c0_i32, %c0_i32_0 : i32, i32
  }
  func.func @transform_3(%arg0: i32, %arg1: i32) -> (i32, i32) {
    %c0_i32 = arith.constant 0 : i32
    %c0_i32_0 = arith.constant 0 : i32
    %c0_i32_1 = arith.constant 0 : i32
    return %c0_i32, %c0_i32_0 : i32, i32
  }
  func.func @transform_4(%arg0: i32, %arg1: i32) -> (i32, i32) {
    %c0_i32 = arith.constant 0 : i32
    %c0_i32_0 = arith.constant 0 : i32
    return %arg0, %c0_i32 : i32, i32
  }
  func.func @transform_5(%arg0: i32, %arg1: i32) -> (i32, i32) {
    %c0_i32 = arith.constant 0 : i32
    %c0_i32_0 = arith.constant 0 : i32
    return %arg0, %c0_i32 : i32, i32
  }
}

</mosaic_0001>

<llo_original>
// kernel: hnhn_conv.3
$region0: #{hnhn_conv.3}
  #allocation0 [shape = 'u32[]', space=smem, size = 0x4, offset = 0x4, fixed_abs, tag = 'smem constant byte address 0x4 - core index']
  #allocation1 [shape = 'u32[144,128]{1,0:T(1,128)}', space=vmem, size = 0x12000, scoped, tag = 'internal scratch']
  #allocation2 [shape = 'f32[32,128]{1,0:T(8,128)}', space=vmem, size = 0x4000, scoped, tag = 'scratch operand']
  %s0 = inlined_call_operand.vmem [shape: f32[128,128], index: 0, kind: input, shape index: {}]
  %s1 = inlined_call_operand.vmem [shape: bf16[32,128], index: 1, kind: input, shape index: {}]
  %s2 = inlined_call_operand.vmem [shape: f32[128,128], index: 2, kind: input, shape index: {}]
  %s3 = inlined_call_operand.vmem [shape: f32[1,128], index: 3, kind: input, shape index: {}]
  %s4 = inlined_call_operand.vmem [shape: f32[32,1], index: 4, kind: input, shape index: {}]
  %s5 = inlined_call_operand.hbm [shape: f32[32,128], index: 5, kind: output, shape index: {}]
  %s6 = sld [smem:[#allocation0]]
  $region38: #{hnhn_conv.3} parent=0
    _
  %s8 = ssub.s32 1, %s6
  %s9 = scalar_select 0, %s8, %s6
  $region1: #{hnhn_conv.3} parent=0
    #allocation3 [shape = 'u8[16384]{0}', space=vmem, size = 0x4000, scoped, tag = 'output window, operand 0, single buffered']
    #allocation4 [shape = 's32[1]{0}', space=sflag, size = 0x4, scoped, tag = 'scoped memory for hnhn_conv.3']
    %10 = vsyncpa [#allocation4], 0
    // Predicated region
    $region2: #{hnhn_conv.3} parent=1 // pred_check
      _
    $region3: #{hnhn_conv.3} parent=1 // pred_check_branch
      %12 = sbr.rel (0) target = $region5
    $region4: #{hnhn_conv.3} parent=1 // pred_region
      _
    $region5: #{hnhn_conv.3} parent=1 // pred_fallthru
      _
    // Predicated region
    $region6: #{hnhn_conv.3} parent=1 // pred_check
      _
    $region7: #{hnhn_conv.3} parent=1 // pred_check_branch
      %14 = sbr.rel (0) target = $region9
    $region8: #{hnhn_conv.3} parent=1 // pred_region
      _
    $region9: #{hnhn_conv.3} parent=1 // pred_fallthru
      _
    // Predicated region
    $region10: #{hnhn_conv.3} parent=1 // pred_check
      _
    $region11: #{hnhn_conv.3} parent=1 // pred_check_branch
      %16 = sbr.rel (0) target = $region13
    $region12: #{hnhn_conv.3} parent=1 // pred_region
      _
    $region13: #{hnhn_conv.3} parent=1 // pred_fallthru
      _
    // Predicated region
    $region14: #{hnhn_conv.3} parent=1 // pred_check
      _
    $region15: #{hnhn_conv.3} parent=1 // pred_check_branch
      %18 = sbr.rel (0) target = $region17
    $region16: #{hnhn_conv.3} parent=1 // pred_region
      _
    $region17: #{hnhn_conv.3} parent=1 // pred_fallthru
      _
    // Predicated region
    $region18: #{hnhn_conv.3} parent=1 // pred_check
      _
    $region19: #{hnhn_conv.3} parent=1 // pred_check_branch
      %20 = sbr.rel (0) target = $region21
    $region20: #{hnhn_conv.3} parent=1 // pred_region
      _
    $region21: #{hnhn_conv.3} parent=1 // pred_fallthru
      _
    %p21 = scmp.eq.s32.totalorder 0, 0
    // Predicated region
    $region22: #{hnhn_conv.3} parent=1 // pred_check
      %p22 = pneg %p21
    $region23: #{hnhn_conv.3} parent=1 // pred_check_branch
      %24 = sbr.rel (%p22) target = $region25
    $region24: #{hnhn_conv.3} parent=1 // pred_region
      %25 = vst [vmem:[#allocation2] sm:$0xff] 0.0
      %26 = vst [vmem:[#allocation2 + $0x8] sm:$0xff] 0.0
      %27 = vst [vmem:[#allocation2 + $0x10] sm:$0xff] 0.0
      %28 = vst [vmem:[#allocation2 + $0x18] sm:$0xff] 0.0
    $region25: #{hnhn_conv.3} parent=1 // pred_fallthru
      _
    %v29 = vld [vmem:[%s0] sm:$0xff]
    %v30 = vld [vmem:[%s0 + $0x8] sm:$0xff]
    %v31 = vld [vmem:[%s0 + $0x10] sm:$0xff]
    %v32 = vld [vmem:[%s0 + $0x18] sm:$0xff]
    %v33 = vld [vmem:[%s0 + $0x20] sm:$0xff]
    %v34 = vld [vmem:[%s0 + $0x28] sm:$0xff]
    %v35 = vld [vmem:[%s0 + $0x30] sm:$0xff]
    %v36 = vld [vmem:[%s0 + $0x38] sm:$0xff]
    %v37 = vld [vmem:[%s0 + $0x40] sm:$0xff]
    %v38 = vld [vmem:[%s0 + $0x48] sm:$0xff]
    %v39 = vld [vmem:[%s0 + $0x50] sm:$0xff]
    %v40 = vld [vmem:[%s0 + $0x58] sm:$0xff]
    %v41 = vld [vmem:[%s0 + $0x60] sm:$0xff]
    %v42 = vld [vmem:[%s0 + $0x68] sm:$0xff]
    %v43 = vld [vmem:[%s0 + $0x70] sm:$0xff]
    %v44 = vld [vmem:[%s0 + $0x78] sm:$0xff]
    %v45 = vld [vmem:[%s2] sm:$0xff]
    %v46 = vld [vmem:[%s2 + $0x8] sm:$0xff]
    %v47 = vld [vmem:[%s2 + $0x10] sm:$0xff]
    %v48 = vld [vmem:[%s2 + $0x18] sm:$0xff]
    %v49 = vld [vmem:[%s2 + $0x20] sm:$0xff]
    %v50 = vld [vmem:[%s2 + $0x28] sm:$0xff]
    %v51 = vld [vmem:[%s2 + $0x30] sm:$0xff]
    %v52 = vld [vmem:[%s2 + $0x38] sm:$0xff]
    %v53 = vld [vmem:[%s2 + $0x40] sm:$0xff]
    %v54 = vld [vmem:[%s2 + $0x48] sm:$0xff]
    %v55 = vld [vmem:[%s2 + $0x50] sm:$0xff]
    %v56 = vld [vmem:[%s2 + $0x58] sm:$0xff]
    %v57 = vld [vmem:[%s2 + $0x60] sm:$0xff]
    %v58 = vld [vmem:[%s2 + $0x68] sm:$0xff]
    %v59 = vld [vmem:[%s2 + $0x70] sm:$0xff]
    %v60 = vld [vmem:[%s2 + $0x78] sm:$0xff]
    %v61 = vld [vmem:[%s3] sm:$0x1]
    %v63 = vlaneseq
    %v64 = vshrl.u32 %v63, 7
    %v65 = vsub.s32 0, %v64
    %v66 = vrot.slane %v61, %v65
    %68 = vmatprep.subr.mxu0 0.0
    %69 = vmatpush1.msra.mxu0 %v45
    %70 = vmatprep.subr.mxu0 0.0
    %71 = vmatpush1.msra.mxu0 %v46
    %72 = vmatprep.subr.mxu0 0.0
    %73 = vmatpush1.msra.mxu0 %v47
    %74 = vmatprep.subr.mxu0 0.0
    %75 = vmatpush1.msra.mxu0 %v48
    %76 = vmatprep.subr.mxu0 0.0
    %77 = vmatpush1.msra.mxu0 %v49
    %78 = vmatprep.subr.mxu0 0.0
    %79 = vmatpush1.msra.mxu0 %v50
    %80 = vmatprep.subr.mxu0 0.0
    %81 = vmatpush1.msra.mxu0 %v51
    %82 = vmatprep.subr.mxu0 0.0
    %83 = vmatpush1.msra.mxu0 %v52
    %84 = vmatprep.subr.mxu0 0.0
    %85 = vmatpush1.msra.mxu0 %v53
    %86 = vmatprep.subr.mxu0 0.0
    %87 = vmatpush1.msra.mxu0 %v54
    %88 = vmatprep.subr.mxu0 0.0
    %89 = vmatpush1.msra.mxu0 %v55
    %90 = vmatprep.subr.mxu0 0.0
    %91 = vmatpush1.msra.mxu0 %v56
    %92 = vmatprep.subr.mxu0 0.0
    %93 = vmatpush1.msra.mxu0 %v57
    %94 = vmatprep.subr.mxu0 0.0
    %95 = vmatpush1.msra.mxu0 %v58
    %96 = vmatprep.subr.mxu0 0.0
    %97 = vmatpush1.msra.mxu0 %v59
    %98 = vmatprep.subr.mxu0 0.0
    %99 = vmatpush1.msra.mxu0 %v60
    %100 = vmatprep.subr.mxu0 0.0
    %101 = vmatpush1.msra.mxu0 0.0
    %102 = vmatprep.subr.mxu0 0.0
    %103 = vmatpush1.msra.mxu0 0.0
    %104 = vmatprep.subr.mxu0 0.0
    %105 = vmatpush1.msra.mxu0 0.0
    %106 = vmatprep.subr.mxu0 0.0
    %107 = vmatpush1.msra.mxu0 0.0
    %108 = vmatprep.subr.mxu0 0.0
    %109 = vmatpush1.msra.mxu0 0.0
    %110 = vmatprep.subr.mxu0 0.0
    %111 = vmatpush1.msra.mxu0 0.0
    %112 = vmatprep.subr.mxu0 0.0
    %113 = vmatpush1.msra.mxu0 0.0
    %114 = vmatprep.subr.mxu0 0.0
    %115 = vmatpush1.msra.mxu0 0.0
    %116 = vmatprep.subr.mxu0 0.0
    %117 = vmatpush1.msra.mxu0 0.0
    %118 = vmatprep.subr.mxu0 0.0
    %119 = vmatpush1.msra.mxu0 0.0
    %120 = vmatprep.subr.mxu0 0.0
    %121 = vmatpush1.msra.mxu0 0.0
    %122 = vmatprep.subr.mxu0 0.0
    %123 = vmatpush1.msra.mxu0 0.0
    %124 = vmatprep.subr.mxu0 0.0
    %125 = vmatpush1.msra.mxu0 0.0
    %126 = vmatprep.subr.mxu0 0.0
    %127 = vmatpush1.msra.mxu0 0.0
    %128 = vmatprep.subr.mxu0 0.0
    %129 = vmatpush1.msra.mxu0 0.0
    %130 = vmatprep.subr.mxu0 0.0
    %131 = vmatpush1.msra.mxu0 0.0
    %132 = vmatprep.mubr.f32.mxu0 0.0
    %133 = vmatmul.mubr.f32.gmra.mrb[0].mxu0 %v29
    %v134 = vpop.f32.mrb[0].mxu0
    %v135 = vadd.f32 %v66, %v134
    %v136 = vpop.f32.mrb[0].mxu0
    %137 = vmatprep.mubr.f32.mxu0 0.0
    %138 = vmatmul.mubr.f32.gmra.mrb[0].mxu0 %v30
    %v139 = vpop.f32.mrb[0].mxu0
    %v140 = vadd.f32 %v66, %v139
    %v141 = vpop.f32.mrb[0].mxu0
    %142 = vmatprep.mubr.f32.mxu0 0.0
    %143 = vmatmul.mubr.f32.gmra.mrb[0].mxu0 %v31
    %v144 = vpop.f32.mrb[0].mxu0
    %v145 = vadd.f32 %v66, %v144
    %v146 = vpop.f32.mrb[0].mxu0
    %147 = vmatprep.mubr.f32.mxu0 0.0
    %148 = vmatmul.mubr.f32.gmra.mrb[0].mxu0 %v32
    %v149 = vpop.f32.mrb[0].mxu0
    %v150 = vadd.f32 %v66, %v149
    %v151 = vpop.f32.mrb[0].mxu0
    %152 = vmatprep.mubr.f32.mxu0 0.0
    %153 = vmatmul.mubr.f32.gmra.mrb[0].mxu0 %v33
    %v154 = vpop.f32.mrb[0].mxu0
    %v155 = vadd.f32 %v66, %v154
    %v156 = vpop.f32.mrb[0].mxu0
    %157 = vmatprep.mubr.f32.mxu0 0.0
    %158 = vmatmul.mubr.f32.gmra.mrb[0].mxu0 %v34
    %v159 = vpop.f32.mrb[0].mxu0
    %v160 = vadd.f32 %v66, %v159
    %v161 = vpop.f32.mrb[0].mxu0
    %162 = vmatprep.mubr.f32.mxu0 0.0
    %163 = vmatmul.mubr.f32.gmra.mrb[0].mxu0 %v35
    %v164 = vpop.f32.mrb[0].mxu0
    %v165 = vadd.f32 %v66, %v164
    %v166 = vpop.f32.mrb[0].mxu0
    %167 = vmatprep.mubr.f32.mxu0 0.0
    %168 = vmatmul.mubr.f32.gmra.mrb[0].mxu0 %v36
    %v169 = vpop.f32.mrb[0].mxu0
    %v170 = vadd.f32 %v66, %v169
    %v171 = vpop.f32.mrb[0].mxu0
    %172 = vmatprep.mubr.f32.mxu0 0.0
    %173 = vmatmul.mubr.f32.gmra.mrb[0].mxu0 %v37
    %v174 = vpop.f32.mrb[0].mxu0
    %v175 = vadd.f32 %v66, %v174
    %v176 = vpop.f32.mrb[0].mxu0
    %177 = vmatprep.mubr.f32.mxu0 0.0
    %178 = vmatmul.mubr.f32.gmra.mrb[0].mxu0 %v38
    %v179 = vpop.f32.mrb[0].mxu0
    %v180 = vadd.f32 %v66, %v179
    %v181 = vpop.f32.mrb[0].mxu0
    %182 = vmatprep.mubr.f32.mxu0 0.0
    %183 = vmatmul.mubr.f32.gmra.mrb[0].mxu0 %v39
    %v184 = vpop.f32.mrb[0].mxu0
    %v185 = vadd.f32 %v66, %v184
    %v186 = vpop.f32.mrb[0].mxu0
    %187 = vmatprep.mubr.f32.mxu0 0.0
    %188 = vmatmul.mubr.f32.gmra.mrb[0].mxu0 %v40
    %v189 = vpop.f32.mrb[0].mxu0
    %v190 = vadd.f32 %v66, %v189
    %v191 = vpop.f32.mrb[0].mxu0
    %192 = vmatprep.mubr.f32.mxu0 0.0
    %193 = vmatmul.mubr.f32.gmra.mrb[0].mxu0 %v41
    %v194 = vpop.f32.mrb[0].mxu0
    %v195 = vadd.f32 %v66, %v194
    %v196 = vpop.f32.mrb[0].mxu0
    %197 = vmatprep.mubr.f32.mxu0 0.0
    %198 = vmatmul.mubr.f32.gmra.mrb[0].mxu0 %v42
    %v199 = vpop.f32.mrb[0].mxu0
    %v200 = vadd.f32 %v66, %v199
    %v201 = vpop.f32.mrb[0].mxu0
    %202 = vmatprep.mubr.f32.mxu0 0.0
    %203 = vmatmul.mubr.f32.gmra.mrb[0].mxu0 %v43
    %v204 = vpop.f32.mrb[0].mxu0
    %v205 = vadd.f32 %v66, %v204
    %v206 = vpop.f32.mrb[0].mxu0
    %207 = vmatprep.mubr.f32.mxu0 0.0
    %208 = vmatmul.mubr.f32.gmra.mrb[0].mxu0 %v44
    %v209 = vpop.f32.mrb[0].mxu0
    %v210 = vadd.f32 %v66, %v209
    %v211 = vpop.f32.mrb[0].mxu0
    %212 = vdwg.mxu0
    %v213 = vld [vmem:[%s1] sm:$0xf]
    %v214 = vld [vmem:[%s1 + $0x4] sm:$0xf]
    %v215 = vld [vmem:[%s1 + $0x8] sm:$0xf]
    %v216 = vld [vmem:[%s1 + $0xc] sm:$0xf]
    %v217 = vunpack.c.l.bf16 %v213
    %v218 = vunpack.c.l.bf16 %v214
    %v219 = vunpack.c.l.bf16 %v215
    %v220 = vunpack.c.l.bf16 %v216
    %v221 = vld [vmem:[#allocation2] sm:$0xff]
    %v222 = vld [vmem:[#allocation2 + $0x8] sm:$0xff]
    %v223 = vld [vmem:[#allocation2 + $0x10] sm:$0xff]
    %v224 = vld [vmem:[#allocation2 + $0x18] sm:$0xff]
    %225 = vmatprep.subr.mxu0 0.0
    %226 = vmatpush1.msra.mxu0 %v135
    %227 = vmatprep.subr.mxu0 0.0
    %228 = vmatpush1.msra.mxu0 %v140
    %229 = vmatprep.subr.mxu0 0.0
    %230 = vmatpush1.msra.mxu0 %v145
    %231 = vmatprep.subr.mxu0 0.0
    %232 = vmatpush1.msra.mxu0 %v150
    %233 = vmatprep.subr.mxu0 0.0
    %234 = vmatpush1.msra.mxu0 %v155
    %235 = vmatprep.subr.mxu0 0.0
    %236 = vmatpush1.msra.mxu0 %v160
    %237 = vmatprep.subr.mxu0 0.0
    %238 = vmatpush1.msra.mxu0 %v165
    %239 = vmatprep.subr.mxu0 0.0
    %240 = vmatpush1.msra.mxu0 %v170
    %241 = vmatprep.subr.mxu0 0.0
    %242 = vmatpush1.msra.mxu0 %v175
    %243 = vmatprep.subr.mxu0 0.0
    %244 = vmatpush1.msra.mxu0 %v180
    %245 = vmatprep.subr.mxu0 0.0
    %246 = vmatpush1.msra.mxu0 %v185
    %247 = vmatprep.subr.mxu0 0.0
    %248 = vmatpush1.msra.mxu0 %v190
    %249 = vmatprep.subr.mxu0 0.0
    %250 = vmatpush1.msra.mxu0 %v195
    %251 = vmatprep.subr.mxu0 0.0
    %252 = vmatpush1.msra.mxu0 %v200
    %253 = vmatprep.subr.mxu0 0.0
    %254 = vmatpush1.msra.mxu0 %v205
    %255 = vmatprep.subr.mxu0 0.0
    %256 = vmatpush1.msra.mxu0 %v210
    %257 = vmatprep.subr.mxu0 0.0
    %258 = vmatpush1.msra.mxu0 0.0
    %259 = vmatprep.subr.mxu0 0.0
    %260 = vmatpush1.msra.mxu0 0.0
    %261 = vmatprep.subr.mxu0 0.0
    %262 = vmatpush1.msra.mxu0 0.0
    %263 = vmatprep.subr.mxu0 0.0
    %264 = vmatpush1.msra.mxu0 0.0
    %265 = vmatprep.subr.mxu0 0.0
    %266 = vmatpush1.msra.mxu0 0.0
    %267 = vmatprep.subr.mxu0 0.0
    %268 = vmatpush1.msra.mxu0 0.0
    %269 = vmatprep.subr.mxu0 0.0
    %270 = vmatpush1.msra.mxu0 0.0
    %271 = vmatprep.subr.mxu0 0.0
    %272 = vmatpush1.msra.mxu0 0.0
    %273 = vmatprep.subr.mxu0 0.0
    %274 = vmatpush1.msra.mxu0 0.0
    %275 = vmatprep.subr.mxu0 0.0
    %276 = vmatpush1.msra.mxu0 0.0
    %277 = vmatprep.subr.mxu0 0.0
    %278 = vmatpush1.msra.mxu0 0.0
    %279 = vmatprep.subr.mxu0 0.0
    %280 = vmatpush1.msra.mxu0 0.0
    %281 = vmatprep.subr.mxu0 0.0
    %282 = vmatpush1.msra.mxu0 0.0
    %283 = vmatprep.subr.mxu0 0.0
    %284 = vmatpush1.msra.mxu0 0.0
    %285 = vmatprep.subr.mxu0 0.0
    %286 = vmatpush1.msra.mxu0 0.0
    %287 = vmatprep.subr.mxu0 0.0
    %288 = vmatpush1.msra.mxu0 0.0
    %289 = vmatprep.mubr.f32.mxu0 0.0
    %290 = vmatmul.mubr.f32.gmra.mrb[0].mxu0 %v217
    %v291 = vpop.f32.mrb[0].mxu0
    %v292 = vadd.f32 0.0, %v291
    %v293 = vpop.f32.mrb[0].mxu0
    %294 = vmatprep.mubr.f32.mxu0 0.0
    %295 = vmatmul.mubr.f32.gmra.mrb[0].mxu0 %v218
    %v296 = vpop.f32.mrb[0].mxu0
    %v297 = vadd.f32 0.0, %v296
    %v298 = vpop.f32.mrb[0].mxu0
    %299 = vmatprep.mubr.f32.mxu0 0.0
    %300 = vmatmul.mubr.f32.gmra.mrb[0].mxu0 %v219
    %v301 = vpop.f32.mrb[0].mxu0
    %v302 = vadd.f32 0.0, %v301
    %v303 = vpop.f32.mrb[0].mxu0
    %304 = vmatprep.mubr.f32.mxu0 0.0
    %305 = vmatmul.mubr.f32.gmra.mrb[0].mxu0 %v220
    %v306 = vpop.f32.mrb[0].mxu0
    %v307 = vadd.f32 0.0, %v306
    %v308 = vpop.f32.mrb[0].mxu0
    %309 = vdwg.mxu0
    %v310 = vadd.f32 %v221, %v292
    %v311 = vadd.f32 %v222, %v297
    %v312 = vadd.f32 %v223, %v302
    %v313 = vadd.f32 %v224, %v307
    %314 = vst [vmem:[#allocation2] sm:$0xff] %v310
    %315 = vst [vmem:[#allocation2 + $0x8] sm:$0xff] %v311
    %316 = vst [vmem:[#allocation2 + $0x10] sm:$0xff] %v312
    %317 = vst [vmem:[#allocation2 + $0x18] sm:$0xff] %v313
    // Predicated region
    $region26: #{hnhn_conv.3} parent=1 // pred_check
      %p318 = pneg %p21
    $region27: #{hnhn_conv.3} parent=1 // pred_check_branch
      %320 = sbr.rel (%p318) target = $region29
    $region28: #{hnhn_conv.3} parent=1 // pred_region
      %v321 = vld [vmem:[#allocation2] sm:$0xff]
      %v322 = vld [vmem:[#allocation2 + $0x8] sm:$0xff]
      %v323 = vld [vmem:[#allocation2 + $0x10] sm:$0xff]
      %v324 = vld [vmem:[#allocation2 + $0x18] sm:$0xff]
      %v325 = vld [vmem:[%s4] sm:$0xff]
      %v326 = vld [vmem:[%s4 + $0x8] sm:$0xff]
      %v327 = vld [vmem:[%s4 + $0x10] sm:$0xff]
      %v328 = vld [vmem:[%s4 + $0x18] sm:$0xff]
      %330 = vset.pattern.permute.xlu0 0
      %331 = vperm.xlu0 %330, %v325
      %v332 = vpop.permute.xlu0 %331
      %335 = vset.pattern.permute.xlu0 0
      %336 = vperm.xlu0 %335, %v326
      %v337 = vpop.permute.xlu0 %336
      %340 = vset.pattern.permute.xlu0 0
      %341 = vperm.xlu0 %340, %v327
      %v342 = vpop.permute.xlu0 %341
      %345 = vset.pattern.permute.xlu0 0
      %346 = vperm.xlu0 %345, %v328
      %v347 = vpop.permute.xlu0 %346
      %v349 = vmul.f32 %v321, %v332
      %v350 = vmul.f32 %v322, %v337
      %v351 = vmul.f32 %v323, %v342
      %v352 = vmul.f32 %v324, %v347
      %v353 = vmax.f32 %v349, 0.0
      %v354 = vmax.f32 %v350, 0.0
      %v355 = vmax.f32 %v351, 0.0
      %v356 = vmax.f32 %v352, 0.0
      %357 = vst [vmem:[#allocation3] sm:$0xff] %v353
      %358 = vst [vmem:[#allocation3 + $0x8] sm:$0xff] %v354
      %359 = vst [vmem:[#allocation3 + $0x10] sm:$0xff] %v355
      %360 = vst [vmem:[#allocation3 + $0x18] sm:$0xff] %v356
    $region29: #{hnhn_conv.3} parent=1 // pred_fallthru
      _
    // Predicated region
    $region30: #{hnhn_conv.3} parent=1 // pred_check
      _
    $region31: #{hnhn_conv.3} parent=1 // pred_check_branch
      %362 = sbr.rel (0) target = $region33
    $region32: #{hnhn_conv.3} parent=1 // pred_region
      %s364 = ssub.s32 512, 512
      %365 = vsyncadd [#allocation4], %s364
      %s366 = sshll.u32 [#allocation3], 4
      %s367 = int_to_ptr.vmem [resolvable:$true] %s366
      %372 = dma.vmem_to_hbm [thread:$0]  %s367, 512, %s5, [#allocation4], 128, 128, 8
    $region33: #{hnhn_conv.3} parent=1 // pred_fallthru
      _
    // Predicated region
    $region34: #{hnhn_conv.3} parent=1 // pred_check
      _
    $region35: #{hnhn_conv.3} parent=1 // pred_check_branch
      %374 = sbr.rel (0) target = $region37
    $region36: #{hnhn_conv.3} parent=1 // pred_region
      %375 = dma.done [#allocation4], 512
    $region37: #{hnhn_conv.3} parent=1 // pred_fallthru
      _
    %376 = vsyncpa [#allocation4], 1

// kernel: hnhn_conv.2
$region0: #{hnhn_conv.2}
  #allocation0 [shape = 'u32[]', space=smem, size = 0x4, offset = 0x4, fixed_abs, tag = 'smem constant byte address 0x4 - core index']
  #allocation1 [shape = 'u32[144,128]{1,0:T(1,128)}', space=vmem, size = 0x12000, scoped, tag = 'internal scratch']
  #allocation2 [shape = 'f32[128,128]{1,0:T(8,128)}', space=vmem, size = 0x10000, scoped, tag = 'scratch operand']
  %s0 = inlined_call_operand.vmem [shape: f32[32,128], index: 0, kind: input, shape index: {}]
  %s1 = inlined_call_operand.vmem [shape: bf16[32,128], index: 1, kind: input, shape index: {}]
  %s2 = inlined_call_operand.vmem [shape: f32[128,128], index: 2, kind: input, shape index: {}]
  %s3 = inlined_call_operand.vmem [shape: f32[1,128], index: 3, kind: input, shape index: {}]
  %s4 = inlined_call_operand.vmem [shape: f32[128,1], index: 4, kind: input, shape index: {}]
  %s5 = inlined_call_operand.vmem [shape: f32[128,128], index: 5, kind: output, shape index: {}]
  %s6 = sld [smem:[#allocation0]]
  $region38: #{hnhn_conv.2} parent=0
    _
  %s8 = ssub.s32 1, %s6
  %s9 = scalar_select 0, %s8, %s6
  // Predicated region
  $region2: #{hnhn_conv.2} parent=0 // pred_check
    _
  $region3: #{hnhn_conv.2} parent=0 // pred_check_branch
    %11 = sbr.rel (0) target = $region5
  $region4: #{hnhn_conv.2} parent=0 // pred_region
    _
  $region5: #{hnhn_conv.2} parent=0 // pred_fallthru
    _
  // Predicated region
  $region6: #{hnhn_conv.2} parent=0 // pred_check
    _
  $region7: #{hnhn_conv.2} parent=0 // pred_check_branch
    %13 = sbr.rel (0) target = $region9
  $region8: #{hnhn_conv.2} parent=0 // pred_region
    _
  $region9: #{hnhn_conv.2} parent=0 // pred_fallthru
    _
  // Predicated region
  $region10: #{hnhn_conv.2} parent=0 // pred_check
    _
  $region11: #{hnhn_conv.2} parent=0 // pred_check_branch
    %15 = sbr.rel (0) target = $region13
  $region12: #{hnhn_conv.2} parent=0 // pred_region
    _
  $region13: #{hnhn_conv.2} parent=0 // pred_fallthru
    _
  // Predicated region
  $region14: #{hnhn_conv.2} parent=0 // pred_check
    _
  $region15: #{hnhn_conv.2} parent=0 // pred_check_branch
    %17 = sbr.rel (0) target = $region17
  $region16: #{hnhn_conv.2} parent=0 // pred_region
    _
  $region17: #{hnhn_conv.2} parent=0 // pred_fallthru
    _
  // Predicated region
  $region18: #{hnhn_conv.2} parent=0 // pred_check
    _
  $region19: #{hnhn_conv.2} parent=0 // pred_check_branch
    %19 = sbr.rel (0) target = $region21
  $region20: #{hnhn_conv.2} parent=0 // pred_region
    _
  $region21: #{hnhn_conv.2} parent=0 // pred_fallthru
    _
  %p20 = scmp.eq.s32.totalorder 0, 0
  // Predicated region
  $region22: #{hnhn_conv.2} parent=0 // pred_check
    %p21 = pneg %p20
  $region23: #{hnhn_conv.2} parent=0 // pred_check_branch
    %23 = sbr.rel (%p21) target = $region25
  $region24: #{hnhn_conv.2} parent=0 // pred_region
    %24 = vst [vmem:[#allocation2] sm:$0xff] 0.0
    %25 = vst [vmem:[#allocation2 + $0x8] sm:$0xff] 0.0
    %26 = vst [vmem:[#allocation2 + $0x10] sm:$0xff] 0.0
    %27 = vst [vmem:[#allocation2 + $0x18] sm:$0xff] 0.0
    %28 = vst [vmem:[#allocation2 + $0x20] sm:$0xff] 0.0
    %29 = vst [vmem:[#allocation2 + $0x28] sm:$0xff] 0.0
    %30 = vst [vmem:[#allocation2 + $0x30] sm:$0xff] 0.0
    %31 = vst [vmem:[#allocation2 + $0x38] sm:$0xff] 0.0
    %32 = vst [vmem:[#allocation2 + $0x40] sm:$0xff] 0.0
    %33 = vst [vmem:[#allocation2 + $0x48] sm:$0xff] 0.0
    %34 = vst [vmem:[#allocation2 + $0x50] sm:$0xff] 0.0
    %35 = vst [vmem:[#allocation2 + $0x58] sm:$0xff] 0.0
    %36 = vst [vmem:[#allocation2 + $0x60] sm:$0xff] 0.0
    %37 = vst [vmem:[#allocation2 + $0x68] sm:$0xff] 0.0
    %38 = vst [vmem:[#allocation2 + $0x70] sm:$0xff] 0.0
    %39 = vst [vmem:[#allocation2 + $0x78] sm:$0xff] 0.0
  $region25: #{hnhn_conv.2} parent=0 // pred_fallthru
    _
  %v40 = vld [vmem:[%s0] sm:$0xff]
  %v41 = vld [vmem:[%s0 + $0x8] sm:$0xff]
  %v42 = vld [vmem:[%s0 + $0x10] sm:$0xff]
  %v43 = vld [vmem:[%s0 + $0x18] sm:$0xff]
  %v44 = vld [vmem:[%s2] sm:$0xff]
  %v45 = vld [vmem:[%s2 + $0x8] sm:$0xff]
  %v46 = vld [vmem:[%s2 + $0x10] sm:$0xff]
  %v47 = vld [vmem:[%s2 + $0x18] sm:$0xff]
  %v48 = vld [vmem:[%s2 + $0x20] sm:$0xff]
  %v49 = vld [vmem:[%s2 + $0x28] sm:$0xff]
  %v50 = vld [vmem:[%s2 + $0x30] sm:$0xff]
  %v51 = vld [vmem:[%s2 + $0x38] sm:$0xff]
  %v52 = vld [vmem:[%s2 + $0x40] sm:$0xff]
  %v53 = vld [vmem:[%s2 + $0x48] sm:$0xff]
  %v54 = vld [vmem:[%s2 + $0x50] sm:$0xff]
  %v55 = vld [vmem:[%s2 + $0x58] sm:$0xff]
  %v56 = vld [vmem:[%s2 + $0x60] sm:$0xff]
  %v57 = vld [vmem:[%s2 + $0x68] sm:$0xff]
  %v58 = vld [vmem:[%s2 + $0x70] sm:$0xff]
  %v59 = vld [vmem:[%s2 + $0x78] sm:$0xff]
  %v60 = vld [vmem:[%s3] sm:$0x1]
  %v62 = vlaneseq
  %v63 = vshrl.u32 %v62, 7
  %v64 = vsub.s32 0, %v63
  %v65 = vrot.slane %v60, %v64
  %67 = vmatprep.subr.mxu0 0.0
  %68 = vmatpush1.msra.mxu0 %v44
  %69 = vmatprep.subr.mxu0 0.0
  %70 = vmatpush1.msra.mxu0 %v45
  %71 = vmatprep.subr.mxu0 0.0
  %72 = vmatpush1.msra.mxu0 %v46
  %73 = vmatprep.subr.mxu0 0.0
  %74 = vmatpush1.msra.mxu0 %v47
  %75 = vmatprep.subr.mxu0 0.0
  %76 = vmatpush1.msra.mxu0 %v48
  %77 = vmatprep.subr.mxu0 0.0
  %78 = vmatpush1.msra.mxu0 %v49
  %79 = vmatprep.subr.mxu0 0.0
  %80 = vmatpush1.msra.mxu0 %v50
  %81 = vmatprep.subr.mxu0 0.0
  %82 = vmatpush1.msra.mxu0 %v51
  %83 = vmatprep.subr.mxu0 0.0
  %84 = vmatpush1.msra.mxu0 %v52
  %85 = vmatprep.subr.mxu0 0.0
  %86 = vmatpush1.msra.mxu0 %v53
  %87 = vmatprep.subr.mxu0 0.0
  %88 = vmatpush1.msra.mxu0 %v54
  %89 = vmatprep.subr.mxu0 0.0
  %90 = vmatpush1.msra.mxu0 %v55
  %91 = vmatprep.subr.mxu0 0.0
  %92 = vmatpush1.msra.mxu0 %v56
  %93 = vmatprep.subr.mxu0 0.0
  %94 = vmatpush1.msra.mxu0 %v57
  %95 = vmatprep.subr.mxu0 0.0
  %96 = vmatpush1.msra.mxu0 %v58
  %97 = vmatprep.subr.mxu0 0.0
  %98 = vmatpush1.msra.mxu0 %v59
  %99 = vmatprep.subr.mxu0 0.0
  %100 = vmatpush1.msra.mxu0 0.0
  %101 = vmatprep.subr.mxu0 0.0
  %102 = vmatpush1.msra.mxu0 0.0
  %103 = vmatprep.subr.mxu0 0.0
  %104 = vmatpush1.msra.mxu0 0.0
  %105 = vmatprep.subr.mxu0 0.0
  %106 = vmatpush1.msra.mxu0 0.0
  %107 = vmatprep.subr.mxu0 0.0
  %108 = vmatpush1.msra.mxu0 0.0
  %109 = vmatprep.subr.mxu0 0.0
  %110 = vmatpush1.msra.mxu0 0.0
  %111 = vmatprep.subr.mxu0 0.0
  %112 = vmatpush1.msra.mxu0 0.0
  %113 = vmatprep.subr.mxu0 0.0
  %114 = vmatpush1.msra.mxu0 0.0
  %115 = vmatprep.subr.mxu0 0.0
  %116 = vmatpush1.msra.mxu0 0.0
  %117 = vmatprep.subr.mxu0 0.0
  %118 = vmatpush1.msra.mxu0 0.0
  %119 = vmatprep.subr.mxu0 0.0
  %120 = vmatpush1.msra.mxu0 0.0
  %121 = vmatprep.subr.mxu0 0.0
  %122 = vmatpush1.msra.mxu0 0.0
  %123 = vmatprep.subr.mxu0 0.0
  %124 = vmatpush1.msra.mxu0 0.0
  %125 = vmatprep.subr.mxu0 0.0
  %126 = vmatpush1.msra.mxu0 0.0
  %127 = vmatprep.subr.mxu0 0.0
  %128 = vmatpush1.msra.mxu0 0.0
  %129 = vmatprep.subr.mxu0 0.0
  %130 = vmatpush1.msra.mxu0 0.0
  %131 = vmatprep.mubr.f32.mxu0 0.0
  %132 = vmatmul.mubr.f32.gmra.mrb[0].mxu0 %v40
  %v133 = vpop.f32.mrb[0].mxu0
  %v134 = vadd.f32 %v65, %v133
  %v135 = vpop.f32.mrb[0].mxu0
  %136 = vmatprep.mubr.f32.mxu0 0.0
  %137 = vmatmul.mubr.f32.gmra.mrb[0].mxu0 %v41
  %v138 = vpop.f32.mrb[0].mxu0
  %v139 = vadd.f32 %v65, %v138
  %v140 = vpop.f32.mrb[0].mxu0
  %141 = vmatprep.mubr.f32.mxu0 0.0
  %142 = vmatmul.mubr.f32.gmra.mrb[0].mxu0 %v42
  %v143 = vpop.f32.mrb[0].mxu0
  %v144 = vadd.f32 %v65, %v143
  %v145 = vpop.f32.mrb[0].mxu0
  %146 = vmatprep.mubr.f32.mxu0 0.0
  %147 = vmatmul.mubr.f32.gmra.mrb[0].mxu0 %v43
  %v148 = vpop.f32.mrb[0].mxu0
  %v149 = vadd.f32 %v65, %v148
  %v150 = vpop.f32.mrb[0].mxu0
  %151 = vdwg.mxu0
  %v152 = vld [vmem:[%s1] sm:$0xf]
  %v153 = vld [vmem:[%s1 + $0x4] sm:$0xf]
  %v154 = vld [vmem:[%s1 + $0x8] sm:$0xf]
  %v155 = vld [vmem:[%s1 + $0xc] sm:$0xf]
  %v156 = vunpack.c.l.bf16 %v152
  %v157 = vunpack.c.l.bf16 %v153
  %v158 = vunpack.c.l.bf16 %v154
  %v159 = vunpack.c.l.bf16 %v155
  %v160 = vld [vmem:[#allocation2] sm:$0xff]
  %v161 = vld [vmem:[#allocation2 + $0x8] sm:$0xff]
  %v162 = vld [vmem:[#allocation2 + $0x10] sm:$0xff]
  %v163 = vld [vmem:[#allocation2 + $0x18] sm:$0xff]
  %v164 = vld [vmem:[#allocation2 + $0x20] sm:$0xff]
  %v165 = vld [vmem:[#allocation2 + $0x28] sm:$0xff]
  %v166 = vld [vmem:[#allocation2 + $0x30] sm:$0xff]
  %v167 = vld [vmem:[#allocation2 + $0x38] sm:$0xff]
  %v168 = vld [vmem:[#allocation2 + $0x40] sm:$0xff]
  %v169 = vld [vmem:[#allocation2 + $0x48] sm:$0xff]
  %v170 = vld [vmem:[#allocation2 + $0x50] sm:$0xff]
  %v171 = vld [vmem:[#allocation2 + $0x58] sm:$0xff]
  %v172 = vld [vmem:[#allocation2 + $0x60] sm:$0xff]
  %v173 = vld [vmem:[#allocation2 + $0x68] sm:$0xff]
  %v174 = vld [vmem:[#allocation2 + $0x70] sm:$0xff]
  %v175 = vld [vmem:[#allocation2 + $0x78] sm:$0xff]
  %176 = vxpose.xlu0.b32.start [1/16] %v156, 128
  %177 = vxpose.xlu0.b32.cont [2/16] %v157, 128
  %178 = vxpose.xlu0.b32.cont [3/16] %v158, 128
  %179 = vxpose.xlu0.b32.cont [4/16] %v159, 128
  %180 = vxpose.xlu0.b32.cont [5/16] 0.0, 128
  %181 = vxpose.xlu0.b32.cont [6/16] 0.0, 128
  %182 = vxpose.xlu0.b32.cont [7/16] 0.0, 128
  %183 = vxpose.xlu0.b32.cont [8/16] 0.0, 128
  %184 = vxpose.xlu0.b32.cont [9/16] 0.0, 128
  %185 = vxpose.xlu0.b32.cont [10/16] 0.0, 128
  %186 = vxpose.xlu0.b32.cont [11/16] 0.0, 128
  %187 = vxpose.xlu0.b32.cont [12/16] 0.0, 128
  %188 = vxpose.xlu0.b32.cont [13/16] 0.0, 128
  %189 = vxpose.xlu0.b32.cont [14/16] 0.0, 128
  %190 = vxpose.xlu0.b32.cont [15/16] 0.0, 128
  %191 = vxpose.xlu0.b32.end [16/16] 0.0, 128
  %v192 = vpop.trf.xlu0
  %v193 = vpop.trf.xlu0
  %v194 = vpop.trf.xlu0
  %v195 = vpop.trf.xlu0
  %v196 = vpop.trf.xlu0
  %v197 = vpop.trf.xlu0
  %v198 = vpop.trf.xlu0
  %v199 = vpop.trf.xlu0
  %v200 = vpop.trf.xlu0
  %v201 = vpop.trf.xlu0
  %v202 = vpop.trf.xlu0
  %v203 = vpop.trf.xlu0
  %v204 = vpop.trf.xlu0
  %v205 = vpop.trf.xlu0
  %v206 = vpop.trf.xlu0
  %v207 = vpop.trf.xlu0
  %vm208 = vcmask 261120
  %v210 = vsel %vm208, %v192, 0
  %v213 = vsel %vm208, %v193, 0
  %v216 = vsel %vm208, %v194, 0
  %v219 = vsel %vm208, %v195, 0
  %v222 = vsel %vm208, %v196, 0
  %v225 = vsel %vm208, %v197, 0
  %v228 = vsel %vm208, %v198, 0
  %v231 = vsel %vm208, %v199, 0
  %v234 = vsel %vm208, %v200, 0
  %v237 = vsel %vm208, %v201, 0
  %v240 = vsel %vm208, %v202, 0
  %v243 = vsel %vm208, %v203, 0
  %v246 = vsel %vm208, %v204, 0
  %v249 = vsel %vm208, %v205, 0
  %v252 = vsel %vm208, %v206, 0
  %v255 = vsel %vm208, %v207, 0
  %257 = vmatprep.subr.mxu0 0.0
  %258 = vmatpush1.msra.mxu0 %v134
  %259 = vmatprep.subr.mxu0 0.0
  %260 = vmatpush1.msra.mxu0 %v139
  %261 = vmatprep.subr.mxu0 0.0
  %262 = vmatpush1.msra.mxu0 %v144
  %263 = vmatprep.subr.mxu0 0.0
  %264 = vmatpush1.msra.mxu0 %v149
  %265 = vmatprep.subr.mxu0 0.0
  %266 = vmatpush1.msra.mxu0 0.0
  %267 = vmatprep.subr.mxu0 0.0
  %268 = vmatpush1.msra.mxu0 0.0
  %269 = vmatprep.subr.mxu0 0.0
  %270 = vmatpush1.msra.mxu0 0.0
  %271 = vmatprep.subr.mxu0 0.0
  %272 = vmatpush1.msra.mxu0 0.0
  %273 = vmatprep.subr.mxu0 0.0
  %274 = vmatpush1.msra.mxu0 0.0
  %275 = vmatprep.subr.mxu0 0.0
  %276 = vmatpush1.msra.mxu0 0.0
  %277 = vmatprep.subr.mxu0 0.0
  %278 = vmatpush1.msra.mxu0 0.0
  %279 = vmatprep.subr.mxu0 0.0
  %280 = vmatpush1.msra.mxu0 0.0
  %281 = vmatprep.subr.mxu0 0.0
  %282 = vmatpush1.msra.mxu0 0.0
  %283 = vmatprep.subr.mxu0 0.0
  %284 = vmatpush1.msra.mxu0 0.0
  %285 = vmatprep.subr.mxu0 0.0
  %286 = vmatpush1.msra.mxu0 0.0
  %287 = vmatprep.subr.mxu0 0.0
  %288 = vmatpush1.msra.mxu0 0.0
  %289 = vmatprep.subr.mxu0 0.0
  %290 = vmatpush1.msra.mxu0 0.0
  %291 = vmatprep.subr.mxu0 0.0
  %292 = vmatpush1.msra.mxu0 0.0
  %293 = vmatprep.subr.mxu0 0.0
  %294 = vmatpush1.msra.mxu0 0.0
  %295 = vmatprep.subr.mxu0 0.0
  %296 = vmatpush1.msra.mxu0 0.0
  %297 = vmatprep.subr.mxu0 0.0
  %298 = vmatpush1.msra.mxu0 0.0
  %299 = vmatprep.subr.mxu0 0.0
  %300 = vmatpush1.msra.mxu0 0.0
  %301 = vmatprep.subr.mxu0 0.0
  %302 = vmatpush1.msra.mxu0 0.0
  %303 = vmatprep.subr.mxu0 0.0
  %304 = vmatpush1.msra.mxu0 0.0
  %305 = vmatprep.subr.mxu0 0.0
  %306 = vmatpush1.msra.mxu0 0.0
  %307 = vmatprep.subr.mxu0 0.0
  %308 = vmatpush1.msra.mxu0 0.0
  %309 = vmatprep.subr.mxu0 0.0
  %310 = vmatpush1.msra.mxu0 0.0
  %311 = vmatprep.subr.mxu0 0.0
  %312 = vmatpush1.msra.mxu0 0.0
  %313 = vmatprep.subr.mxu0 0.0
  %314 = vmatpush1.msra.mxu0 0.0
  %315 = vmatprep.subr.mxu0 0.0
  %316 = vmatpush1.msra.mxu0 0.0
  %317 = vmatprep.subr.mxu0 0.0
  %318 = vmatpush1.msra.mxu0 0.0
  %319 = vmatprep.subr.mxu0 0.0
  %320 = vmatpush1.msra.mxu0 0.0
  %321 = vmatprep.mubr.f32.mxu0 0.0
  %322 = vmatmul.mubr.f32.gmra.mrb[0].mxu0 %v210
  %v323 = vpop.f32.mrb[0].mxu0
  %v324 = vadd.f32 0.0, %v323
  %v325 = vpop.f32.mrb[0].mxu0
  %326 = vmatprep.mubr.f32.mxu0 0.0
  %327 = vmatmul.mubr.f32.gmra.mrb[0].mxu0 %v213
  %v328 = vpop.f32.mrb[0].mxu0
  %v329 = vadd.f32 0.0, %v328
  %v330 = vpop.f32.mrb[0].mxu0
  %331 = vmatprep.mubr.f32.mxu0 0.0
  %332 = vmatmul.mubr.f32.gmra.mrb[0].mxu0 %v216
  %v333 = vpop.f32.mrb[0].mxu0
  %v334 = vadd.f32 0.0, %v333
  %v335 = vpop.f32.mrb[0].mxu0
  %336 = vmatprep.mubr.f32.mxu0 0.0
  %337 = vmatmul.mubr.f32.gmra.mrb[0].mxu0 %v219
  %v338 = vpop.f32.mrb[0].mxu0
  %v339 = vadd.f32 0.0, %v338
  %v340 = vpop.f32.mrb[0].mxu0
  %341 = vmatprep.mubr.f32.mxu0 0.0
  %342 = vmatmul.mubr.f32.gmra.mrb[0].mxu0 %v222
  %v343 = vpop.f32.mrb[0].mxu0
  %v344 = vadd.f32 0.0, %v343
  %v345 = vpop.f32.mrb[0].mxu0
  %346 = vmatprep.mubr.f32.mxu0 0.0
  %347 = vmatmul.mubr.f32.gmra.mrb[0].mxu0 %v225
  %v348 = vpop.f32.mrb[0].mxu0
  %v349 = vadd.f32 0.0, %v348
  %v350 = vpop.f32.mrb[0].mxu0
  %351 = vmatprep.mubr.f32.mxu0 0.0
  %352 = vmatmul.mubr.f32.gmra.mrb[0].mxu0 %v228
  %v353 = vpop.f32.mrb[0].mxu0
  %v354 = vadd.f32 0.0, %v353
  %v355 = vpop.f32.mrb[0].mxu0
  %356 = vmatprep.mubr.f32.mxu0 0.0
  %357 = vmatmul.mubr.f32.gmra.mrb[0].mxu0 %v231
  %v358 = vpop.f32.mrb[0].mxu0
  %v359 = vadd.f32 0.0, %v358
  %v360 = vpop.f32.mrb[0].mxu0
  %361 = vmatprep.mubr.f32.mxu0 0.0
  %362 = vmatmul.mubr.f32.gmra.mrb[0].mxu0 %v234
  %v363 = vpop.f32.mrb[0].mxu0
  %v364 = vadd.f32 0.0, %v363
  %v365 = vpop.f32.mrb[0].mxu0
  %366 = vmatprep.mubr.f32.mxu0 0.0
  %367 = vmatmul.mubr.f32.gmra.mrb[0].mxu0 %v237
  %v368 = vpop.f32.mrb[0].mxu0
  %v369 = vadd.f32 0.0, %v368
  %v370 = vpop.f32.mrb[0].mxu0
  %371 = vmatprep.mubr.f32.mxu0 0.0
  %372 = vmatmul.mubr.f32.gmra.mrb[0].mxu0 %v240
  %v373 = vpop.f32.mrb[0].mxu0
  %v374 = vadd.f32 0.0, %v373
  %v375 = vpop.f32.mrb[0].mxu0
  %376 = vmatprep.mubr.f32.mxu0 0.0
  %377 = vmatmul.mubr.f32.gmra.mrb[0].mxu0 %v243
  %v378 = vpop.f32.mrb[0].mxu0
  %v379 = vadd.f32 0.0, %v378
  %v380 = vpop.f32.mrb[0].mxu0
  %381 = vmatprep.mubr.f32.mxu0 0.0
  %382 = vmatmul.mubr.f32.gmra.mrb[0].mxu0 %v246
  %v383 = vpop.f32.mrb[0].mxu0
  %v384 = vadd.f32 0.0, %v383
  %v385 = vpop.f32.mrb[0].mxu0
  %386 = vmatprep.mubr.f32.mxu0 0.0
  %387 = vmatmul.mubr.f32.gmra.mrb[0].mxu0 %v249
  %v388 = vpop.f32.mrb[0].mxu0
  %v389 = vadd.f32 0.0, %v388
  %v390 = vpop.f32.mrb[0].mxu0
  %391 = vmatprep.mubr.f32.mxu0 0.0
  %392 = vmatmul.mubr.f32.gmra.mrb[0].mxu0 %v252
  %v393 = vpop.f32.mrb[0].mxu0
  %v394 = vadd.f32 0.0, %v393
  %v395 = vpop.f32.mrb[0].mxu0
  %396 = vmatprep.mubr.f32.mxu0 0.0
  %397 = vmatmul.mubr.f32.gmra.mrb[0].mxu0 %v255
  %v398 = vpop.f32.mrb[0].mxu0
  %v399 = vadd.f32 0.0, %v398
  %v400 = vpop.f32.mrb[0].mxu0
  %401 = vdwg.mxu0
  %v402 = vadd.f32 %v160, %v324
  %v403 = vadd.f32 %v161, %v329
  %v404 = vadd.f32 %v162, %v334
  %v405 = vadd.f32 %v163, %v339
  %v406 = vadd.f32 %v164, %v344
  %v407 = vadd.f32 %v165, %v349
  %v408 = vadd.f32 %v166, %v354
  %v409 = vadd.f32 %v167, %v359
  %v410 = vadd.f32 %v168, %v364
  %v411 = vadd.f32 %v169, %v369
  %v412 = vadd.f32 %v170, %v374
  %v413 = vadd.f32 %v171, %v379
  %v414 = vadd.f32 %v172, %v384
  %v415 = vadd.f32 %v173, %v389
  %v416 = vadd.f32 %v174, %v394
  %v417 = vadd.f32 %v175, %v399
  %418 = vst [vmem:[#allocation2] sm:$0xff] %v402
  %419 = vst [vmem:[#allocation2 + $0x8] sm:$0xff] %v403
  %420 = vst [vmem:[#allocation2 + $0x10] sm:$0xff] %v404
  %421 = vst [vmem:[#allocation2 + $0x18] sm:$0xff] %v405
  %422 = vst [vmem:[#allocation2 + $0x20] sm:$0xff] %v406
  %423 = vst [vmem:[#allocation2 + $0x28] sm:$0xff] %v407
  %424 = vst [vmem:[#allocation2 + $0x30] sm:$0xff] %v408
  %425 = vst [vmem:[#allocation2 + $0x38] sm:$0xff] %v409
  %426 = vst [vmem:[#allocation2 + $0x40] sm:$0xff] %v410
  %427 = vst [vmem:[#allocation2 + $0x48] sm:$0xff] %v411
  %428 = vst [vmem:[#allocation2 + $0x50] sm:$0xff] %v412
  %429 = vst [vmem:[#allocation2 + $0x58] sm:$0xff] %v413
  %430 = vst [vmem:[#allocation2 + $0x60] sm:$0xff] %v414
  %431 = vst [vmem:[#allocation2 + $0x68] sm:$0xff] %v415
  %432 = vst [vmem:[#allocation2 + $0x70] sm:$0xff] %v416
  %433 = vst [vmem:[#allocation2 + $0x78] sm:$0xff] %v417
  // Predicated region
  $region26: #{hnhn_conv.2} parent=0 // pred_check
    %p434 = pneg %p20
  $region27: #{hnhn_conv.2} parent=0 // pred_check_branch
    %436 = sbr.rel (%p434) target = $region29
  $region28: #{hnhn_conv.2} parent=0 // pred_region
    %v437 = vld [vmem:[#allocation2] sm:$0xff]
    %v438 = vld [vmem:[#allocation2 + $0x8] sm:$0xff]
    %v439 = vld [vmem:[#allocation2 + $0x10] sm:$0xff]
    %v440 = vld [vmem:[#allocation2 + $0x18] sm:$0xff]
    %v441 = vld [vmem:[#allocation2 + $0x20] sm:$0xff]
    %v442 = vld [vmem:[#allocation2 + $0x28] sm:$0xff]
    %v443 = vld [vmem:[#allocation2 + $0x30] sm:$0xff]
    %v444 = vld [vmem:[#allocation2 + $0x38] sm:$0xff]
    %v445 = vld [vmem:[#allocation2 + $0x40] sm:$0xff]
    %v446 = vld [vmem:[#allocation2 + $0x48] sm:$0xff]
    %v447 = vld [vmem:[#allocation2 + $0x50] sm:$0xff]
    %v448 = vld [vmem:[#allocation2 + $0x58] sm:$0xff]
    %v449 = vld [vmem:[#allocation2 + $0x60] sm:$0xff]
    %v450 = vld [vmem:[#allocation2 + $0x68] sm:$0xff]
    %v451 = vld [vmem:[#allocation2 + $0x70] sm:$0xff]
    %v452 = vld [vmem:[#allocation2 + $0x78] sm:$0xff]
    %v453 = vld [vmem:[%s4] sm:$0xff]
    %v454 = vld [vmem:[%s4 + $0x8] sm:$0xff]
    %v455 = vld [vmem:[%s4 + $0x10] sm:$0xff]
    %v456 = vld [vmem:[%s4 + $0x18] sm:$0xff]
    %v457 = vld [vmem:[%s4 + $0x20] sm:$0xff]
    %v458 = vld [vmem:[%s4 + $0x28] sm:$0xff]
    %v459 = vld [vmem:[%s4 + $0x30] sm:$0xff]
    %v460 = vld [vmem:[%s4 + $0x38] sm:$0xff]
    %v461 = vld [vmem:[%s4 + $0x40] sm:$0xff]
    %v462 = vld [vmem:[%s4 + $0x48] sm:$0xff]
    %v463 = vld [vmem:[%s4 + $0x50] sm:$0xff]
    %v464 = vld [vmem:[%s4 + $0x58] sm:$0xff]
    %v465 = vld [vmem:[%s4 + $0x60] sm:$0xff]
    %v466 = vld [vmem:[%s4 + $0x68] sm:$0xff]
    %v467 = vld [vmem:[%s4 + $0x70] sm:$0xff]
    %v468 = vld [vmem:[%s4 + $0x78] sm:$0xff]
    %470 = vset.pattern.permute.xlu0 0
    %471 = vperm.xlu0 %470, %v453
    %v472 = vpop.permute.xlu0 %471
    %475 = vset.pattern.permute.xlu0 0
    %476 = vperm.xlu0 %475, %v454
    %v477 = vpop.permute.xlu0 %476
    %480 = vset.pattern.permute.xlu0 0
    %481 = vperm.xlu0 %480, %v455
    %v482 = vpop.permute.xlu0 %481
    %485 = vset.pattern.permute.xlu0 0
    %486 = vperm.xlu0 %485, %v456
    %v487 = vpop.permute.xlu0 %486
    %490 = vset.pattern.permute.xlu0 0
    %491 = vperm.xlu0 %490, %v457
    %v492 = vpop.permute.xlu0 %491
    %495 = vset.pattern.permute.xlu0 0
    %496 = vperm.xlu0 %495, %v458
    %v497 = vpop.permute.xlu0 %496
    %500 = vset.pattern.permute.xlu0 0
    %501 = vperm.xlu0 %500, %v459
    %v502 = vpop.permute.xlu0 %501
    %505 = vset.pattern.permute.xlu0 0
    %506 = vperm.xlu0 %505, %v460
    %v507 = vpop.permute.xlu0 %506
    %510 = vset.pattern.permute.xlu0 0
    %511 = vperm.xlu0 %510, %v461
    %v512 = vpop.permute.xlu0 %511
    %515 = vset.pattern.permute.xlu0 0
    %516 = vperm.xlu0 %515, %v462
    %v517 = vpop.permute.xlu0 %516
    %520 = vset.pattern.permute.xlu0 0
    %521 = vperm.xlu0 %520, %v463
    %v522 = vpop.permute.xlu0 %521
    %525 = vset.pattern.permute.xlu0 0
    %526 = vperm.xlu0 %525, %v464
    %v527 = vpop.permute.xlu0 %526
    %530 = vset.pattern.permute.xlu0 0
    %531 = vperm.xlu0 %530, %v465
    %v532 = vpop.permute.xlu0 %531
    %535 = vset.pattern.permute.xlu0 0
    %536 = vperm.xlu0 %535, %v466
    %v537 = vpop.permute.xlu0 %536
    %540 = vset.pattern.permute.xlu0 0
    %541 = vperm.xlu0 %540, %v467
    %v542 = vpop.permute.xlu0 %541
    %545 = vset.pattern.permute.xlu0 0
    %546 = vperm.xlu0 %545, %v468
    %v547 = vpop.permute.xlu0 %546
    %v549 = vmul.f32 %v437, %v472
    %v550 = vmul.f32 %v438, %v477
    %v551 = vmul.f32 %v439, %v482
    %v552 = vmul.f32 %v440, %v487
    %v553 = vmul.f32 %v441, %v492
    %v554 = vmul.f32 %v442, %v497
    %v555 = vmul.f32 %v443, %v502
    %v556 = vmul.f32 %v444, %v507
    %v557 = vmul.f32 %v445, %v512
    %v558 = vmul.f32 %v446, %v517
    %v559 = vmul.f32 %v447, %v522
    %v560 = vmul.f32 %v448, %v527
    %v561 = vmul.f32 %v449, %v532
    %v562 = vmul.f32 %v450, %v537
    %v563 = vmul.f32 %v451, %v542
    %v564 = vmul.f32 %v452, %v547
    %v565 = vmax.f32 %v549, 0.0
    %v566 = vmax.f32 %v550, 0.0
    %v567 = vmax.f32 %v551, 0.0
    %v568 = vmax.f32 %v552, 0.0
    %v569 = vmax.f32 %v553, 0.0
    %v570 = vmax.f32 %v554, 0.0
    %v571 = vmax.f32 %v555, 0.0
    %v572 = vmax.f32 %v556, 0.0
    %v573 = vmax.f32 %v557, 0.0
    %v574 = vmax.f32 %v558, 0.0
    %v575 = vmax.f32 %v559, 0.0
    %v576 = vmax.f32 %v560, 0.0
    %v577 = vmax.f32 %v561, 0.0
    %v578 = vmax.f32 %v562, 0.0
    %v579 = vmax.f32 %v563, 0.0
    %v580 = vmax.f32 %v564, 0.0
    %581 = vst [vmem:[%s5] sm:$0xff] %v565
    %582 = vst [vmem:[%s5 + $0x8] sm:$0xff] %v566
    %583 = vst [vmem:[%s5 + $0x10] sm:$0xff] %v567
    %584 = vst [vmem:[%s5 + $0x18] sm:$0xff] %v568
    %585 = vst [vmem:[%s5 + $0x20] sm:$0xff] %v569
    %586 = vst [vmem:[%s5 + $0x28] sm:$0xff] %v570
    %587 = vst [vmem:[%s5 + $0x30] sm:$0xff] %v571
    %588 = vst [vmem:[%s5 + $0x38] sm:$0xff] %v572
    %589 = vst [vmem:[%s5 + $0x40] sm:$0xff] %v573
    %590 = vst [vmem:[%s5 + $0x48] sm:$0xff] %v574
    %591 = vst [vmem:[%s5 + $0x50] sm:$0xff] %v575
    %592 = vst [vmem:[%s5 + $0x58] sm:$0xff] %v576
    %593 = vst [vmem:[%s5 + $0x60] sm:$0xff] %v577
    %594 = vst [vmem:[%s5 + $0x68] sm:$0xff] %v578
    %595 = vst [vmem:[%s5 + $0x70] sm:$0xff] %v579
    %596 = vst [vmem:[%s5 + $0x78] sm:$0xff] %v580
  $region29: #{hnhn_conv.2} parent=0 // pred_fallthru
    _
  // Predicated region
  $region30: #{hnhn_conv.2} parent=0 // pred_check
    _
  $region31: #{hnhn_conv.2} parent=0 // pred_check_branch
    %598 = sbr.rel (0) target = $region33
  $region32: #{hnhn_conv.2} parent=0 // pred_region
    _
  $region33: #{hnhn_conv.2} parent=0 // pred_fallthru
    _
  // Predicated region
  $region34: #{hnhn_conv.2} parent=0 // pred_check
    _
  $region35: #{hnhn_conv.2} parent=0 // pred_check_branch
    %600 = sbr.rel (0) target = $region37
  $region36: #{hnhn_conv.2} parent=0 // pred_region
    _
  $region37: #{hnhn_conv.2} parent=0 // pred_fallthru
    _

</llo_original>
